<compile_context>
chip_gen: v6e
topology: v6e:2x2x1
jax: 0.10.0
libtpu: 0.0.40
codegen_flags: <defaults>
</compile_context>

<pallas_src>
import functools

import jax
import jax.numpy as jnp
from jax.experimental import pallas as pl
from jax.experimental.pallas import tpu as pltpu


def _round_up(x, m):
    return ((x + m - 1) // m) * m


def sage_kernel(off_ref, cnt_ref,                       # scalar-prefetch (SMEM)
                dst_ref, msg_in_ref, nf_ref, norm_ref,
                wm_ref, was_ref, wan_ref, bm_ref, ba_ref,
                out_ref, acc_ref):
    n = pl.program_id(0)
    e = pl.program_id(1)

    @pl.when(e == 0)
    def _():
        acc_ref[...] = jnp.zeros_like(acc_ref)

    # ---- accumulate only edge tiles that actually hold edges for this N tile
    @pl.when(e < cnt_ref[n])
    def _():
        # message matmul for this edge tile: m = [h_src | e_feat] @ W_msg   [te, Dp] fp32
        m = jnp.dot(msg_in_ref[...], wm_ref[...], preferred_element_type=jnp.float32)
        # block-local one-hot scatter A[tn, te] from a cheap (tn,1) vs (1,te) compare;
        # padded edges (dst = -1) and edges of other N tiles never match.
        tn = out_ref.shape[0]
        local_ids = jax.lax.broadcasted_iota(jnp.int32, (tn, 1), 0)       # [tn, 1]
        A = (local_ids == (dst_ref[...] - n * tn)).astype(jnp.bfloat16)   # [tn, te]
        acc_ref[...] += jnp.dot(A, m.astype(jnp.bfloat16),
                                preferred_element_type=jnp.float32)

    # ---- finalize: mean-normalize (+ folded message bias), apply-linear, relu
    @pl.when(e == pl.num_programs(1) - 1)
    def _():
        inv_deg = norm_ref[:, 0:1]
        has_edge = norm_ref[:, 1:2]
        h_neigh = (acc_ref[...] * inv_deg + bm_ref[...] * has_edge).astype(jnp.bfloat16)
        out = (jnp.dot(nf_ref[...], was_ref[...], preferred_element_type=jnp.float32)
               + jnp.dot(h_neigh, wan_ref[...], preferred_element_type=jnp.float32)
               + ba_ref[...])
        out_ref[...] = jnp.maximum(out, 0.0)


@functools.partial(jax.jit, static_argnames=("tn", "te"))
def sage_layer_forward(nfeats, efeats, src, dst, params, tn=None, te=None):
    """Wrapper mirroring SAGELayer.forward (activation fixed to relu, as used)."""
    squeeze = (nfeats.ndim == 3)
    nf = nfeats[:, 0, :] if squeeze else nfeats        # [N, Din]
    ef = efeats[:, 0, :] if squeeze else efeats        # [E, De]
    nf = nf.astype(jnp.float32)
    ef = ef.astype(jnp.float32)

    N, Din = nf.shape
    E, De = ef.shape
    Dout = params["b_apply"].shape[-1]
    Dp = _round_up(Dout, 128)                          # lane-dense output width
    Kp = _round_up(Din + De, 128)                      # lane-dense merged message K

    src = src.astype(jnp.int32)
    dst = dst.astype(jnp.int32)

    # ---- tile sizes: big tiles amortize per-step overhead; >=2 N tiles for v7x megacore
    if tn is None:
        tn = min(512, _round_up(max((N + 1) // 2, 8), 8))
    if te is None:
        te = min(2048, _round_up(max(E, 1), 128))
    N_pad = _round_up(N, tn)
    E_pad = _round_up(E, te)
    n_tiles = N_pad // tn
    e_tiles = E_pad // te

    # ---- dst-bucketing: sort edges by destination so each N tile touches a
    #      contiguous run of edge tiles; per-tile (offset, count) -> scalar prefetch.
    order = jnp.argsort(dst)
    dst_s = dst[order]
    src_s = src[order]

    # cast to bf16 BEFORE gather/concat/pad (halves wrapper staging traffic)
    nf_b = nf.astype(jnp.bfloat16)
    ef_b = ef.astype(jnp.bfloat16)[order]
    msg_in = jnp.concatenate([nf_b[src_s], ef_b], axis=-1)                 # [E, Din+De]
    msg_in = jnp.pad(msg_in, ((0, E_pad - E), (0, Kp - (Din + De))))       # [E_pad, Kp]

    # padded edges get dst = -1 so they never match any node id (exactly dropped)
    dst_row = jnp.pad(dst_s, (0, E_pad - E), constant_values=-1).reshape(1, E_pad)

    node_bounds = jnp.arange(n_tiles + 1, dtype=jnp.int32) * tn
    edge_bounds = jnp.searchsorted(dst_s, node_bounds, side="left").astype(jnp.int32)
    lo, hi = edge_bounds[:-1], edge_bounds[1:]
    e_off = jnp.minimum(lo // te, e_tiles - 1).astype(jnp.int32)           # [n_tiles]
    e_cnt = jnp.where(hi > lo, (hi + te - 1) // te - lo // te, 0).astype(jnp.int32)

    # ---- mean normalization + has-edge flag (message bias folded into finalize)
    deg = jnp.zeros((N,), jnp.float32).at[dst].add(1.0)
    norm = jnp.stack([1.0 / jnp.maximum(deg, 1.0),
                      (deg > 0).astype(jnp.float32)], axis=-1)             # [N, 2]
    norm = jnp.pad(norm, ((0, N_pad - N), (0, 0)))

    nf_p = jnp.pad(nf_b, ((0, N_pad - N), (0, 0)))                         # [N_pad, Din]

    # ---- lane-dense padded weights (bf16) / biases (fp32)
    def pad_cols(w):
        return jnp.pad(w, ((0, 0), (0, Dp - Dout)))

    W_msg = jnp.concatenate([params["W_msg_node"], params["W_msg_edge"]], axis=0)
    W_msg = jnp.pad(pad_cols(W_msg),
                    ((0, Kp - (Din + De)), (0, 0))).astype(jnp.bfloat16)   # [Kp, Dp]
    b_msg = pad_cols(params["b_msg"]).astype(jnp.float32)                  # [1, Dp]
    W_apply_self = pad_cols(params["W_apply_self"]).astype(jnp.bfloat16)   # [Din, Dp]
    W_apply_neigh = jnp.pad(params["W_apply_neigh"],
                            ((0, Dp - Dout), (0, Dp - Dout))).astype(jnp.bfloat16)
    b_apply = pad_cols(params["b_apply"]).astype(jnp.float32)              # [1, Dp]

    def edge_block(n, e, off, cnt):
        # skipped steps re-use the last valid block -> no redundant DMA
        return off[n] + jnp.minimum(e, jnp.maximum(cnt[n] - 1, 0))

    out = pl.pallas_call(
        sage_kernel,
        out_shape=jax.ShapeDtypeStruct((N_pad, Dp), jnp.float32),
        grid_spec=pltpu.PrefetchScalarGridSpec(
            num_scalar_prefetch=2,
            grid=(n_tiles, e_tiles),
            in_specs=[
                pl.BlockSpec((1, te),
                             lambda n, e, off, cnt: (0, edge_block(n, e, off, cnt))),
                pl.BlockSpec((te, Kp),
                             lambda n, e, off, cnt: (edge_block(n, e, off, cnt), 0)),
                pl.BlockSpec((tn, Din), lambda n, e, off, cnt: (n, 0)),    # self feats
                pl.BlockSpec((tn, 2), lambda n, e, off, cnt: (n, 0)),      # inv_deg|flag
                pl.BlockSpec((Kp, Dp), lambda n, e, off, cnt: (0, 0)),     # W_msg
                pl.BlockSpec((Din, Dp), lambda n, e, off, cnt: (0, 0)),    # W_apply_self
                pl.BlockSpec((Dp, Dp), lambda n, e, off, cnt: (0, 0)),     # W_apply_neigh
                pl.BlockSpec((1, Dp), lambda n, e, off, cnt: (0, 0)),      # b_msg
                pl.BlockSpec((1, Dp), lambda n, e, off, cnt: (0, 0)),      # b_apply
            ],
            out_specs=pl.BlockSpec((tn, Dp), lambda n, e, off, cnt: (n, 0)),
            scratch_shapes=[pltpu.VMEM((tn, Dp), jnp.float32)],            # h_sum acc
        ),
        compiler_params=pltpu.CompilerParams(
            dimension_semantics=("parallel", "arbitrary"),
            vmem_limit_bytes=32 * 1024 * 1024),
    )(e_off, e_cnt, dst_row, msg_in, nf_p, norm,
      W_msg, W_apply_self, W_apply_neigh, b_msg, b_apply)

    out = out[:N, :Dout]
    return out[:, None, :] if squeeze else out


def init_params(key, ndim_in, edims, ndim_out):
    """Deterministic init matching nn.Linear shapes (stored as [in, out])."""
    k = jax.random.split(key, 4)
    fan_msg = ndim_in + edims
    fan_apply = ndim_in + ndim_out
    bnd_m = 1.0 / jnp.sqrt(fan_msg)
    bnd_a = 1.0 / jnp.sqrt(fan_apply)
    W_msg = jax.random.uniform(k[0], (fan_msg, ndim_out), jnp.float32, -bnd_m, bnd_m)
    b_msg = jax.random.uniform(k[1], (1, ndim_out), jnp.float32, -bnd_m, bnd_m)
    W_apply = jax.random.uniform(k[2], (fan_apply, ndim_out), jnp.float32, -bnd_a, bnd_a)
    b_apply = jax.random.uniform(k[3], (1, ndim_out), jnp.float32, -bnd_a, bnd_a)
    return {
        "W_msg_node": W_msg[:ndim_in, :],        # multiplies h_src
        "W_msg_edge": W_msg[ndim_in:, :],        # multiplies edge feats
        "b_msg": b_msg,
        "W_apply_self": W_apply[:ndim_in, :],    # multiplies h_self
        "W_apply_neigh": W_apply[ndim_in:, :],   # multiplies h_neigh
        "b_apply": b_apply,
    }


def sage_layer_reference(nfeats, efeats, src, dst, params):
    """Pure-JAX fp32 reference of the DGL/torch forward, for correctness check."""
    nf = nfeats[:, 0, :] if nfeats.ndim == 3 else nfeats
    ef = efeats[:, 0, :] if efeats.ndim == 3 else efeats
    N = nf.shape[0]
    msg_in = jnp.concatenate([nf[src], ef], axis=-1)
    W_msg = jnp.concatenate([params["W_msg_node"], params["W_msg_edge"]], axis=0)
    m = msg_in @ W_msg + params["b_msg"]
    h_sum = jnp.zeros((N, m.shape[-1]), jnp.float32).at[dst].add(m)
    deg = jnp.zeros((N,), jnp.float32).at[dst].add(1.0)
    h_neigh = h_sum / jnp.maximum(deg, 1.0)[:, None]
    W_apply = jnp.concatenate([params["W_apply_self"], params["W_apply_neigh"]], axis=0)
    out = jnp.maximum(jnp.concatenate([nf, h_neigh], -1) @ W_apply + params["b_apply"], 0.0)
    return out[:, None, :] if nfeats.ndim == 3 else out


if __name__ == "__main__":
    key = jax.random.PRNGKey(0)

    def run_case(case_key, N, E, ndim_in, edims, ndim_out, tn=None, te=None):
        k_nf, k_ef, k_src, k_dst, k_par = jax.random.split(case_key, 5)
        nfeats = jax.random.normal(k_nf, (N, 1, ndim_in), jnp.float32)   # 3-D like DGL usage
        efeats = jax.random.normal(k_ef, (E, 1, edims), jnp.float32)
        src = jax.random.randint(k_src, (E,), 0, N, jnp.int32)
        dst = jax.random.randint(k_dst, (E,), 0, N, jnp.int32)
        params = init_params(k_par, ndim_in, edims, ndim_out)
        out = jax.block_until_ready(
            sage_layer_forward(nfeats, efeats, src, dst, params, tn=tn, te=te))
        ref = sage_layer_reference(nfeats, efeats, src, dst, params)
        assert out.shape == (N, 1, ndim_out)
        # bf16 feature/weight path vs fp32 reference -> ~1e-2 agreement
        err = float(jnp.max(jnp.abs(out - ref)))
        assert jnp.allclose(out, ref, atol=5e-2, rtol=5e-2), f"max abs err {err}"

    k1, k2 = jax.random.split(key)
    # Case 1: small graph, 2 N tiles (tn=8), single edge tile.
    run_case(k1, N=16, E=64, ndim_in=32, edims=16, ndim_out=32)
    # Case 2: multi N-tile x multi E-tile grid (tn=16 -> 3 N tiles, te=128 -> 5 E tiles):
    # exercises cross-tile accumulation, dst-bucket skipping, dst=-1 padding,
    # and a non-multiple-of-128 Dout slice.
    run_case(k2, N=48, E=600, ndim_in=24, edims=12, ndim_out=40, tn=16, te=128)

    print("KERNEL_OK")
</pallas_src>

<mosaic_0001>
module attributes {stable_mosaic.version = 11 : i64} {
  func.func private @main(%arg0: i32) attributes {dimension_semantics = [#tpu.dimension_semantics<core_parallel>], iteration_bounds = array<i64: 2>, tpu.core_type = #tpu.core_type<sc_scalar_subcore>, window_params = []} {
    return
  }
}

module attributes {stable_mosaic.version = 11 : i64} {
  func.func private @main(%arg0: i32) attributes {dimension_semantics = [#tpu.dimension_semantics<core_parallel>], iteration_bounds = array<i64: 2>, tpu.core_type = #tpu.core_type<sc_scalar_subcore>, window_params = []} {
    return
  }
}

module attributes {stable_mosaic.version = 11 : i64} {
  func.func @sage_kernel(%arg0: i32, %arg1: i32, %arg2: memref<2xi32, #tpu.memory_space<smem>>, %arg3: memref<2xi32, #tpu.memory_space<smem>>, %arg4: memref<1x128xi32, #tpu.memory_space<vmem>>, %arg5: memref<128x128xbf16, #tpu.memory_space<vmem>>, %arg6: memref<8x32xbf16, #tpu.memory_space<vmem>>, %arg7: memref<8x2xf32, #tpu.memory_space<vmem>>, %arg8: memref<128x128xbf16, #tpu.memory_space<vmem>>, %arg9: memref<32x128xbf16, #tpu.memory_space<vmem>>, %arg10: memref<128x128xbf16, #tpu.memory_space<vmem>>, %arg11: memref<1x128xf32, #tpu.memory_space<vmem>>, %arg12: memref<1x128xf32, #tpu.memory_space<vmem>>, %arg13: memref<8x128xf32, #tpu.memory_space<vmem>>, %arg14: memref<8x128xf32, #tpu.memory_space<vmem>>) attributes {dimension_semantics = [#tpu.dimension_semantics<parallel>, #tpu.dimension_semantics<arbitrary>], iteration_bounds = array<i64: 2, 1>, scalar_prefetch = 2 : i64, scratch_operands = 1 : i64, tpu.core_type = #tpu.core_type<tc>, window_params = [{transform_indices = @transform_0, window_bounds = array<i64: 1, 128>}, {transform_indices = @transform_1, window_bounds = array<i64: 128, 128>}, {transform_indices = @transform_2, window_bounds = array<i64: 8, 32>}, {transform_indices = @transform_3, window_bounds = array<i64: 8, 2>}, {pipeline_mode = #tpu.pipeline_mode<synchronous>, transform_indices = @transform_4, window_bounds = array<i64: 128, 128>}, {pipeline_mode = #tpu.pipeline_mode<synchronous>, transform_indices = @transform_5, window_bounds = array<i64: 32, 128>}, {pipeline_mode = #tpu.pipeline_mode<synchronous>, transform_indices = @transform_6, window_bounds = array<i64: 128, 128>}, {pipeline_mode = #tpu.pipeline_mode<synchronous>, transform_indices = @transform_7, window_bounds = array<i64: 1, 128>}, {pipeline_mode = #tpu.pipeline_mode<synchronous>, transform_indices = @transform_8, window_bounds = array<i64: 1, 128>}, {transform_indices = @transform_9, window_bounds = array<i64: 8, 128>}]} {
    %c0_i32 = arith.constant 0 : i32
    %0 = arith.cmpi eq, %arg1, %c0_i32 : i32
    %1 = arith.extui %0 : i1 to i32
    %c0_i32_0 = arith.constant 0 : i32
    %2 = arith.cmpi ne, %1, %c0_i32_0 : i32
    scf.if %2 {
      %cst = arith.constant 0.000000e+00 : f32
      %11 = vector.broadcast %cst : f32 to vector<8x128xf32>
      %c0 = arith.constant 0 : index
      %c0_4 = arith.constant 0 : index
      %12 = vector.load %arg14[%c0, %c0_4] : memref<8x128xf32, #tpu.memory_space<vmem>>, vector<8x128xf32>
      tpu.vector_store %arg14[%c0, %c0_4], %11 {strides = array<i32>} : memref<8x128xf32, #tpu.memory_space<vmem>>, vector<8x128xf32>,
    } else {
    }
    %3 = arith.index_cast %arg0 : i32 to index
    %4 = memref.load %arg3[%3] : memref<2xi32, #tpu.memory_space<smem>>
    %5 = arith.cmpi slt, %arg1, %4 : i32
    %6 = arith.extui %5 : i1 to i32
    %c0_i32_1 = arith.constant 0 : i32
    %7 = arith.cmpi ne, %6, %c0_i32_1 : i32
    scf.if %7 {
      %c0 = arith.constant 0 : index
      %c0_4 = arith.constant 0 : index
      %11 = vector.load %arg5[%c0, %c0_4] : memref<128x128xbf16, #tpu.memory_space<vmem>>, vector<128x128xbf16>
      %c0_5 = arith.constant 0 : index
      %c0_6 = arith.constant 0 : index
      %12 = vector.load %arg8[%c0_5, %c0_6] : memref<128x128xbf16, #tpu.memory_space<vmem>>, vector<128x128xbf16>
      %cst = arith.constant dense<0.000000e+00> : vector<128x128xf32>
      %13 = tpu.matmul %11, %12, %cst {dimension_numbers = #tpu.dot_dimension_numbers<[1], [0], [0], [1], [0, 0, 1, 1], [], []>} : vector<128x128xbf16>, vector<128x128xbf16>, vector<128x128xf32> -> vector<128x128xf32>
      %14 = tpu.iota {dimensions = array<i32: 0>} : vector<8x1xi32>
      %c0_7 = arith.constant 0 : index
      %c0_8 = arith.constant 0 : index
      %15 = vector.load %arg4[%c0_7, %c0_8] : memref<1x128xi32, #tpu.memory_space<vmem>>, vector<1x128xi32>
      %c8_i32 = arith.constant 8 : i32
      %16 = arith.muli %arg0, %c8_i32 : i32
      %17 = vector.broadcast %16 : i32 to vector<1x128xi32>
      %18 = arith.subi %15, %17 : vector<1x128xi32>
      %19 = vector.broadcast %14 : vector<8x1xi32> to vector<8x128xi32>
      %20 = vector.broadcast %18 : vector<1x128xi32> to vector<8x128xi32>
      %21 = arith.cmpi eq, %19, %20 : vector<8x128xi32>
      %22 = arith.extui %21 : vector<8x128xi1> to vector<8x128xi32>
      %23 = arith.sitofp %22 : vector<8x128xi32> to vector<8x128xf32>
      %24 = arith.truncf %23 : vector<8x128xf32> to vector<8x128xbf16>
      %c0_9 = arith.constant 0 : index
      %c0_10 = arith.constant 0 : index
      %25 = vector.load %arg14[%c0_9, %c0_10] : memref<8x128xf32, #tpu.memory_space<vmem>>, vector<8x128xf32>
      %26 = arith.truncf %13 : vector<128x128xf32> to vector<128x128xbf16>
      %cst_11 = arith.constant dense<0.000000e+00> : vector<8x128xf32>
      %27 = tpu.matmul %24, %26, %cst_11 {dimension_numbers = #tpu.dot_dimension_numbers<[1], [0], [0], [1], [0, 0, 1, 1], [], []>} : vector<8x128xbf16>, vector<128x128xbf16>, vector<8x128xf32> -> vector<8x128xf32>
      %28 = arith.addf %25, %27 : vector<8x128xf32>
      %c0_12 = arith.constant 0 : index
      %c0_13 = arith.constant 0 : index
      %29 = vector.load %arg14[%c0_12, %c0_13] : memref<8x128xf32, #tpu.memory_space<vmem>>, vector<8x128xf32>
      tpu.vector_store %arg14[%c0_12, %c0_13], %28 {strides = array<i32>} : memref<8x128xf32, #tpu.memory_space<vmem>>, vector<8x128xf32>,
    } else {
    }
    %c0_i32_2 = arith.constant 0 : i32
    %8 = arith.cmpi eq, %arg1, %c0_i32_2 : i32
    %9 = arith.extui %8 : i1 to i32
    %c0_i32_3 = arith.constant 0 : i32
    %10 = arith.cmpi ne, %9, %c0_i32_3 : i32
    scf.if %10 {
      %c0 = arith.constant 0 : index
      %c0_4 = arith.constant 0 : index
      %11 = vector.load %arg7[%c0, %c0_4] : memref<8x2xf32, #tpu.memory_space<vmem>>, vector<8x1xf32>
      %c0_5 = arith.constant 0 : index
      %c1 = arith.constant 1 : index
      %12 = vector.load %arg7[%c0_5, %c1] : memref<8x2xf32, #tpu.memory_space<vmem>>, vector<8x1xf32>
      %c0_6 = arith.constant 0 : index
      %c0_7 = arith.constant 0 : index
      %13 = vector.load %arg14[%c0_6, %c0_7] : memref<8x128xf32, #tpu.memory_space<vmem>>, vector<8x128xf32>
      %14 = vector.broadcast %11 : vector<8x1xf32> to vector<8x128xf32>
      %15 = arith.mulf %13, %14 : vector<8x128xf32>
      %c0_8 = arith.constant 0 : index
      %c0_9 = arith.constant 0 : index
      %16 = vector.load %arg11[%c0_8, %c0_9] : memref<1x128xf32, #tpu.memory_space<vmem>>, vector<1x128xf32>
      %17 = vector.broadcast %16 : vector<1x128xf32> to vector<8x128xf32>
      %18 = vector.broadcast %12 : vector<8x1xf32> to vector<8x128xf32>
      %19 = arith.mulf %17, %18 : vector<8x128xf32>
      %20 = arith.addf %15, %19 : vector<8x128xf32>
      %21 = arith.truncf %20 : vector<8x128xf32> to vector<8x128xbf16>
      %c0_10 = arith.constant 0 : index
      %c0_11 = arith.constant 0 : index
      %22 = vector.load %arg6[%c0_10, %c0_11] : memref<8x32xbf16, #tpu.memory_space<vmem>>, vector<8x32xbf16>
      %c0_12 = arith.constant 0 : index
      %c0_13 = arith.constant 0 : index
      %23 = vector.load %arg9[%c0_12, %c0_13] : memref<32x128xbf16, #tpu.memory_space<vmem>>, vector<32x128xbf16>
      %cst = arith.constant dense<0.000000e+00> : vector<8x128xf32>
      %24 = tpu.matmul %22, %23, %cst {dimension_numbers = #tpu.dot_dimension_numbers<[1], [0], [0], [1], [0, 0, 1, 1], [], []>} : vector<8x32xbf16>, vector<32x128xbf16>, vector<8x128xf32> -> vector<8x128xf32>
      %c0_14 = arith.constant 0 : index
      %c0_15 = arith.constant 0 : index
      %25 = vector.load %arg10[%c0_14, %c0_15] : memref<128x128xbf16, #tpu.memory_space<vmem>>, vector<128x128xbf16>
      %cst_16 = arith.constant dense<0.000000e+00> : vector<8x128xf32>
      %26 = tpu.matmul %21, %25, %cst_16 {dimension_numbers = #tpu.dot_dimension_numbers<[1], [0], [0], [1], [0, 0, 1, 1], [], []>} : vector<8x128xbf16>, vector<128x128xbf16>, vector<8x128xf32> -> vector<8x128xf32>
      %27 = arith.addf %24, %26 : vector<8x128xf32>
      %c0_17 = arith.constant 0 : index
      %c0_18 = arith.constant 0 : index
      %28 = vector.load %arg12[%c0_17, %c0_18] : memref<1x128xf32, #tpu.memory_space<vmem>>, vector<1x128xf32>
      %29 = vector.broadcast %28 : vector<1x128xf32> to vector<8x128xf32>
      %30 = arith.addf %27, %29 : vector<8x128xf32>
      %cst_19 = arith.constant 0.000000e+00 : f32
      %31 = vector.broadcast %cst_19 : f32 to vector<8x128xf32>
      %32 = arith.maximumf %30, %31 : vector<8x128xf32>
      %c0_20 = arith.constant 0 : index
      %c0_21 = arith.constant 0 : index
      %33 = vector.load %arg13[%c0_20, %c0_21] : memref<8x128xf32, #tpu.memory_space<vmem>>, vector<8x128xf32>
      tpu.vector_store %arg13[%c0_20, %c0_21], %32 {strides = array<i32>} : memref<8x128xf32, #tpu.memory_space<vmem>>, vector<8x128xf32>,
    } else {
    }
    return
  }
  func.func @transform_0(%arg0: i32, %arg1: i32, %arg2: memref<2xi32, #tpu.memory_space<smem>>, %arg3: memref<2xi32, #tpu.memory_space<smem>>) -> (i32, i32) {
    %0 = arith.index_cast %arg0 : i32 to index
    %1 = memref.load %arg2[%0] : memref<2xi32, #tpu.memory_space<smem>>
    %2 = arith.index_cast %arg0 : i32 to index
    %3 = memref.load %arg3[%2] : memref<2xi32, #tpu.memory_space<smem>>
    %c1_i32 = arith.constant 1 : i32
    %4 = arith.subi %3, %c1_i32 : i32
    %c0_i32 = arith.constant 0 : i32
    %5 = arith.maxsi %4, %c0_i32 : i32
    %6 = arith.minsi %arg1, %5 : i32
    %7 = arith.addi %1, %6 : i32
    %c0_i32_0 = arith.constant 0 : i32
    %c0_i32_1 = arith.constant 0 : i32
    return %c0_i32_0, %7 : i32, i32
  }
  func.func @transform_1(%arg0: i32, %arg1: i32, %arg2: memref<2xi32, #tpu.memory_space<smem>>, %arg3: memref<2xi32, #tpu.memory_space<smem>>) -> (i32, i32) {
    %0 = arith.index_cast %arg0 : i32 to index
    %1 = memref.load %arg2[%0] : memref<2xi32, #tpu.memory_space<smem>>
    %2 = arith.index_cast %arg0 : i32 to index
    %3 = memref.load %arg3[%2] : memref<2xi32, #tpu.memory_space<smem>>
    %c1_i32 = arith.constant 1 : i32
    %4 = arith.subi %3, %c1_i32 : i32
    %c0_i32 = arith.constant 0 : i32
    %5 = arith.maxsi %4, %c0_i32 : i32
    %6 = arith.minsi %arg1, %5 : i32
    %7 = arith.addi %1, %6 : i32
    %c0_i32_0 = arith.constant 0 : i32
    %c0_i32_1 = arith.constant 0 : i32
    return %7, %c0_i32_0 : i32, i32
  }
  func.func @transform_2(%arg0: i32, %arg1: i32, %arg2: memref<2xi32, #tpu.memory_space<smem>>, %arg3: memref<2xi32, #tpu.memory_space<smem>>) -> (i32, i32) {
    %c0_i32 = arith.constant 0 : i32
    %c0_i32_0 = arith.constant 0 : i32
    return %arg0, %c0_i32 : i32, i32
  }
  func.func @transform_3(%arg0: i32, %arg1: i32, %arg2: memref<2xi32, #tpu.memory_space<smem>>, %arg3: memref<2xi32, #tpu.memory_space<smem>>) -> (i32, i32) {
    %c0_i32 = arith.constant 0 : i32
    %c0_i32_0 = arith.constant 0 : i32
    return %arg0, %c0_i32 : i32, i32
  }
  func.func @transform_4(%arg0: i32, %arg1: i32, %arg2: memref<2xi32, #tpu.memory_space<smem>>, %arg3: memref<2xi32, #tpu.memory_space<smem>>) -> (i32, i32) {
    %c0_i32 = arith.constant 0 : i32
    %c0_i32_0 = arith.constant 0 : i32
    %c0_i32_1 = arith.constant 0 : i32
    return %c0_i32, %c0_i32_0 : i32, i32
  }
  func.func @transform_5(%arg0: i32, %arg1: i32, %arg2: memref<2xi32, #tpu.memory_space<smem>>, %arg3: memref<2xi32, #tpu.memory_space<smem>>) -> (i32, i32) {
    %c0_i32 = arith.constant 0 : i32
    %c0_i32_0 = arith.constant 0 : i32
    %c0_i32_1 = arith.constant 0 : i32
    return %c0_i32, %c0_i32_0 : i32, i32
  }
  func.func @transform_6(%arg0: i32, %arg1: i32, %arg2: memref<2xi32, #tpu.memory_space<smem>>, %arg3: memref<2xi32, #tpu.memory_space<smem>>) -> (i32, i32) {
    %c0_i32 = arith.constant 0 : i32
    %c0_i32_0 = arith.constant 0 : i32
    %c0_i32_1 = arith.constant 0 : i32
    return %c0_i32, %c0_i32_0 : i32, i32
  }
  func.func @transform_7(%arg0: i32, %arg1: i32, %arg2: memref<2xi32, #tpu.memory_space<smem>>, %arg3: memref<2xi32, #tpu.memory_space<smem>>) -> (i32, i32) {
    %c0_i32 = arith.constant 0 : i32
    %c0_i32_0 = arith.constant 0 : i32
    %c0_i32_1 = arith.constant 0 : i32
    return %c0_i32, %c0_i32_0 : i32, i32
  }
  func.func @transform_8(%arg0: i32, %arg1: i32, %arg2: memref<2xi32, #tpu.memory_space<smem>>, %arg3: memref<2xi32, #tpu.memory_space<smem>>) -> (i32, i32) {
    %c0_i32 = arith.constant 0 : i32
    %c0_i32_0 = arith.constant 0 : i32
    %c0_i32_1 = arith.constant 0 : i32
    return %c0_i32, %c0_i32_0 : i32, i32
  }
  func.func @transform_9(%arg0: i32, %arg1: i32, %arg2: memref<2xi32, #tpu.memory_space<smem>>, %arg3: memref<2xi32, #tpu.memory_space<smem>>) -> (i32, i32) {
    %c0_i32 = arith.constant 0 : i32
    %c0_i32_0 = arith.constant 0 : i32
    return %arg0, %c0_i32 : i32, i32
  }
}

</mosaic_0001>

<llo_original>
// kernel: custom-call.1
$region0: #{custom-call.1}
  %s0 = inlined_call_operand.vmem [shape: u32[3], index: 0, kind: output, shape index: {}]

// kernel: sage_layer_forward.1
$region0: #{sage_layer_forward.1}
  #allocation0 [shape = 'u32[]', space=smem, size = 0x4, offset = 0x4, fixed_abs, tag = 'smem constant byte address 0x4 - core index']
  #allocation1 [shape = 'u32[144,128]{1,0:T(1,128)}', space=vmem, size = 0x12000, scoped, tag = 'internal scratch']
  #allocation2 [shape = 'f32[8,128]{1,0:T(8,128)}', space=vmem, size = 0x1000, scoped, tag = 'scratch operand']
  #allocation3 [shape = 's32[1]{0}', space=sflag, size = 0x4, scoped, tag = 'scoped memory for sage_layer_forward.1']
  #allocation4 [shape = 'u8[512]{0}', space=smem, size = 0x200, scoped, tag = 'prefetched SMEM operand 0']
  #allocation5 [shape = 'u8[512]{0}', space=smem, size = 0x200, scoped, tag = 'prefetched SMEM operand 1']
  %s0 = inlined_call_operand.vmem [shape: s32[2], index: 0, kind: input, shape index: {}]
  %s1 = inlined_call_operand.vmem [shape: s32[2], index: 1, kind: input, shape index: {}]
  %s2 = inlined_call_operand.vmem [shape: s32[1,128], index: 2, kind: input, shape index: {}]
  %s3 = inlined_call_operand.vmem [shape: bf16[128,128], index: 3, kind: input, shape index: {}]
  %s4 = inlined_call_operand.vmem [shape: bf16[16,32], index: 4, kind: input, shape index: {}]
  %s5 = inlined_call_operand.vmem [shape: f32[16,2], index: 5, kind: input, shape index: {}]
  %s6 = inlined_call_operand.vmem [shape: bf16[128,128], index: 6, kind: input, shape index: {}]
  %s7 = inlined_call_operand.vmem [shape: bf16[32,128], index: 7, kind: input, shape index: {}]
  %s8 = inlined_call_operand.vmem [shape: bf16[128,128], index: 8, kind: input, shape index: {}]
  %s9 = inlined_call_operand.vmem [shape: f32[1,128], index: 9, kind: input, shape index: {}]
  %s10 = inlined_call_operand.vmem [shape: f32[1,128], index: 10, kind: input, shape index: {}]
  %s11 = inlined_call_operand.hbm [shape: f32[16,128], index: 11, kind: output, shape index: {}]
  %s12 = sld [smem:[#allocation0]]
  $region81: #{sage_layer_forward.1} parent=0
    _
  %s14 = ssub.s32 1, %s12
  %s15 = scalar_select 0, %s14, %s12
  %s16 = sshll.u32 %s0, 4
  %s17 = int_to_ptr.vmem [resolvable:$true] %s16
  %19 = dma.vmem_to_smem %s17, 16, [#allocation4], [#allocation3]
  %s20 = sshll.u32 %s1, 4
  %s21 = int_to_ptr.vmem [resolvable:$true] %s20
  %23 = dma.vmem_to_smem %s21, 16, [#allocation5], [#allocation3]
  %24 = dma.done [#allocation3], 32
  %25 = sfence
  $region1: #{sage_layer_forward.1} parent=0
    #allocation6 [shape = 'u8[8192]{0}', space=vmem, size = 0x2000, scoped, tag = 'output window, operand 0']
    #allocation7 [shape = 's32[2]{0}', space=sflag, size = 0x8, scoped, tag = 'scoped memory for sage_layer_forward.1']
    %26 = vsyncpa [#allocation7], 0
    %s27 = scalar_lea.sflag [#allocation7], 1
    %28 = vsyncpa %s27, 0
    loop: start=0, step=1, limit=4
    $region2: #{sage_layer_forward.1} parent=1 // loop_pre_header
      _
    $region3: #{sage_layer_forward.1} parent=1 // loop_header
      %s30 = sphi 0, %s34
      %p31 = scmp.ge.s32.totalorder %s30, 4
      %s37 = sphi 0, %s49
      %s38 = sphi 0, %s45
      %s39 = sphi 0, %s37
      %s40 = sphi 0, %s38
      %s41 = sphi 0, %s39
      %s42 = sphi 0, %s40
      %s68 = sphi 0, %s70
      %s71 = sphi 0, %s68
      %s72 = sphi 0, %s71
      %s88 = sphi 0, %s72
      %s110 = sphi 0, %s112
      %s113 = sphi 0, %s110
      %s114 = sphi 0, %s113
      %s130 = sphi 0, %s114
      %s136 = sphi 0, %s138
      %s139 = sphi 0, %s136
      %s140 = sphi 0, %s139
      %s156 = sphi 0, %s140
      %s162 = sphi 0, %s164
      %s165 = sphi 0, %s162
      %s166 = sphi 0, %s165
      %s182 = sphi 0, %s166
      %s186 = sphi 0, %s186
      %s188 = sphi 0, %s186
      %s189 = sphi 0, %s188
      %s203 = sphi 0, %s189
      %s207 = sphi 0, %s207
      %s209 = sphi 0, %s207
      %s210 = sphi 0, %s209
      %s224 = sphi 0, %s210
      %s228 = sphi 0, %s228
      %s230 = sphi 0, %s228
      %s231 = sphi 0, %s230
      %s245 = sphi 0, %s231
      %s249 = sphi 0, %s249
      %s251 = sphi 0, %s249
      %s252 = sphi 0, %s251
      %s266 = sphi 0, %s252
      %s270 = sphi 0, %s270
      %s272 = sphi 0, %s270
      %s273 = sphi 0, %s272
      %s287 = sphi 0, %s273
      %s293 = sphi 0, %s295
      %s296 = sphi 0, %s293
      %s297 = sphi 0, %s296
      %s313 = sphi 0, %s297
    $region4: #{sage_layer_forward.1} parent=1 // loop_header_branch
      %33 = sbr.rel (%p31) target = $region8
    $region5: #{sage_layer_forward.1} parent=1 // loop_body
      %s35 = ssub.s32 %s30, 1
      %s36 = ssub.s32 %s30, 2
      %s43 = sadd.s32 1, %s38
      %p44 = scmp.ge.s32.totalorder %s43, 1
      %s45 = scalar_select %p44, 0, %s43
      %s46 = sadd.s32 1, %s37
      %s47 = scalar_select %p44, %s46, %s37
      %p48 = scmp.ge.s32.totalorder %s47, 2
      %s49 = scalar_select %p48, 0, %s47
      %s50 = sld [smem:[#allocation4 + %s37]]
      %s51 = sld [smem:[#allocation5 + %s37]]
      %s52 = ssub.s32 %s51, 1
      %p53 = scmp.gt.s32.totalorder %s52, 0
      %s54 = scalar_select %p53, %s52, 0
      %p55 = scmp.lt.s32.totalorder %s38, %s54
      %s56 = scalar_select %p55, %s38, %s54
      %s57 = sadd.s32 %s50, %s56
      %s58 = sld [smem:[#allocation4 + %s49]]
      %s59 = sld [smem:[#allocation5 + %s49]]
      %s60 = ssub.s32 %s59, 1
      %p61 = scmp.gt.s32.totalorder %s60, 0
      %s62 = scalar_select %p61, %s60, 0
      %p63 = scmp.lt.s32.totalorder %s45, %s62
      %s64 = scalar_select %p63, %s45, %s62
      %s65 = sadd.s32 %s58, %s64
      %s66 = ssub.s32 %s57, %s65
      %p67 = scmp.eq.s32.totalorder %s66, 0
      %s69 = sadd.s32 %s68, 1
      %s70 = scalar_select %p67, %s68, %s69
      %p73 = pneg %p67
      %p74 = scmp.eq.s32.totalorder %s30, 1
      %p75 = por %p73, %p74
      %p76 = scmp.ne.s32.totalorder %s68, %s71
      %p77 = scmp.eq.s32.totalorder %s30, 0
      %p78 = por %p76, %p77
      %p79 = scmp.ne.s32.totalorder %s68, %s71
      %p80 = scmp.eq.s32.totalorder %s35, 1
      %p81 = por %p79, %p80
      %p82 = scmp.ne.s32.totalorder %s71, %s72
      %p83 = scmp.eq.s32.totalorder %s35, 0
      %p84 = por %p82, %p83
      %p85 = scmp.ne.s32.totalorder %s71, %s72
      %p86 = scmp.eq.s32.totalorder %s36, 1
      %p87 = por %p85, %p86
      %p89 = scmp.ne.s32.totalorder %s72, %s88
      %p90 = scmp.eq.s32.totalorder %s36, 0
      %p91 = por %p89, %p90
      %s92 = sld [smem:[#allocation4 + %s37]]
      %s93 = sld [smem:[#allocation5 + %s37]]
      %s94 = ssub.s32 %s93, 1
      %p95 = scmp.gt.s32.totalorder %s94, 0
      %s96 = scalar_select %p95, %s94, 0
      %p97 = scmp.lt.s32.totalorder %s38, %s96
      %s98 = scalar_select %p97, %s38, %s96
      %s99 = sadd.s32 %s92, %s98
      %s100 = sld [smem:[#allocation4 + %s49]]
      %s101 = sld [smem:[#allocation5 + %s49]]
      %s102 = ssub.s32 %s101, 1
      %p103 = scmp.gt.s32.totalorder %s102, 0
      %s104 = scalar_select %p103, %s102, 0
      %p105 = scmp.lt.s32.totalorder %s45, %s104
      %s106 = scalar_select %p105, %s45, %s104
      %s107 = sadd.s32 %s100, %s106
      %s108 = ssub.s32 %s99, %s107
      %p109 = scmp.eq.s32.totalorder %s108, 0
      %s111 = sadd.s32 %s110, 1
      %s112 = scalar_select %p109, %s110, %s111
      %p115 = pneg %p109
      %p116 = scmp.eq.s32.totalorder %s30, 1
      %p117 = por %p115, %p116
      %p118 = scmp.ne.s32.totalorder %s110, %s113
      %p119 = scmp.eq.s32.totalorder %s30, 0
      %p120 = por %p118, %p119
      %p121 = scmp.ne.s32.totalorder %s110, %s113
      %p122 = scmp.eq.s32.totalorder %s35, 1
      %p123 = por %p121, %p122
      %p124 = scmp.ne.s32.totalorder %s113, %s114
      %p125 = scmp.eq.s32.totalorder %s35, 0
      %p126 = por %p124, %p125
      %p127 = scmp.ne.s32.totalorder %s113, %s114
      %p128 = scmp.eq.s32.totalorder %s36, 1
      %p129 = por %p127, %p128
      %p131 = scmp.ne.s32.totalorder %s114, %s130
      %p132 = scmp.eq.s32.totalorder %s36, 0
      %p133 = por %p131, %p132
      %s134 = ssub.s32 %s37, %s49
      %p135 = scmp.eq.s32.totalorder %s134, 0
      %s137 = sadd.s32 %s136, 1
      %s138 = scalar_select %p135, %s136, %s137
      %p141 = pneg %p135
      %p142 = scmp.eq.s32.totalorder %s30, 1
      %p143 = por %p141, %p142
      %p144 = scmp.ne.s32.totalorder %s136, %s139
      %p145 = scmp.eq.s32.totalorder %s30, 0
      %p146 = por %p144, %p145
      %p147 = scmp.ne.s32.totalorder %s136, %s139
      %p148 = scmp.eq.s32.totalorder %s35, 1
      %p149 = por %p147, %p148
      %p150 = scmp.ne.s32.totalorder %s139, %s140
      %p151 = scmp.eq.s32.totalorder %s35, 0
      %p152 = por %p150, %p151
      %p153 = scmp.ne.s32.totalorder %s139, %s140
      %p154 = scmp.eq.s32.totalorder %s36, 1
      %p155 = por %p153, %p154
      %p157 = scmp.ne.s32.totalorder %s140, %s156
      %p158 = scmp.eq.s32.totalorder %s36, 0
      %p159 = por %p157, %p158
      %s160 = ssub.s32 %s37, %s49
      %p161 = scmp.eq.s32.totalorder %s160, 0
      %s163 = sadd.s32 %s162, 1
      %s164 = scalar_select %p161, %s162, %s163
      %p167 = pneg %p161
      %p168 = scmp.eq.s32.totalorder %s30, 1
      %p169 = por %p167, %p168
      %p170 = scmp.ne.s32.totalorder %s162, %s165
      %p171 = scmp.eq.s32.totalorder %s30, 0
      %p172 = por %p170, %p171
      %p173 = scmp.ne.s32.totalorder %s162, %s165
      %p174 = scmp.eq.s32.totalorder %s35, 1
      %p175 = por %p173, %p174
      %p176 = scmp.ne.s32.totalorder %s165, %s166
      %p177 = scmp.eq.s32.totalorder %s35, 0
      %p178 = por %p176, %p177
      %p179 = scmp.ne.s32.totalorder %s165, %s166
      %p180 = scmp.eq.s32.totalorder %s36, 1
      %p181 = por %p179, %p180
      %p183 = scmp.ne.s32.totalorder %s166, %s182
      %p184 = scmp.eq.s32.totalorder %s36, 0
      %p185 = por %p183, %p184
      %s187 = sadd.s32 %s186, 1
      %p190 = scmp.eq.s32.totalorder %s30, 1
      %p191 = scmp.ne.s32.totalorder %s186, %s188
      %p192 = scmp.eq.s32.totalorder %s30, 0
      %p193 = por %p191, %p192
      %p194 = scmp.ne.s32.totalorder %s186, %s188
      %p195 = scmp.eq.s32.totalorder %s35, 1
      %p196 = por %p194, %p195
      %p197 = scmp.ne.s32.totalorder %s188, %s189
      %p198 = scmp.eq.s32.totalorder %s35, 0
      %p199 = por %p197, %p198
      %p200 = scmp.ne.s32.totalorder %s188, %s189
      %p201 = scmp.eq.s32.totalorder %s36, 1
      %p202 = por %p200, %p201
      %p204 = scmp.ne.s32.totalorder %s189, %s203
      %p205 = scmp.eq.s32.totalorder %s36, 0
      %p206 = por %p204, %p205
      %s208 = sadd.s32 %s207, 1
      %p211 = scmp.eq.s32.totalorder %s30, 1
      %p212 = scmp.ne.s32.totalorder %s207, %s209
      %p213 = scmp.eq.s32.totalorder %s30, 0
      %p214 = por %p212, %p213
      %p215 = scmp.ne.s32.totalorder %s207, %s209
      %p216 = scmp.eq.s32.totalorder %s35, 1
      %p217 = por %p215, %p216
      %p218 = scmp.ne.s32.totalorder %s209, %s210
      %p219 = scmp.eq.s32.totalorder %s35, 0
      %p220 = por %p218, %p219
      %p221 = scmp.ne.s32.totalorder %s209, %s210
      %p222 = scmp.eq.s32.totalorder %s36, 1
      %p223 = por %p221, %p222
      %p225 = scmp.ne.s32.totalorder %s210, %s224
      %p226 = scmp.eq.s32.totalorder %s36, 0
      %p227 = por %p225, %p226
      %s229 = sadd.s32 %s228, 1
      %p232 = scmp.eq.s32.totalorder %s30, 1
      %p233 = scmp.ne.s32.totalorder %s228, %s230
      %p234 = scmp.eq.s32.totalorder %s30, 0
      %p235 = por %p233, %p234
      %p236 = scmp.ne.s32.totalorder %s228, %s230
      %p237 = scmp.eq.s32.totalorder %s35, 1
      %p238 = por %p236, %p237
      %p239 = scmp.ne.s32.totalorder %s230, %s231
      %p240 = scmp.eq.s32.totalorder %s35, 0
      %p241 = por %p239, %p240
      %p242 = scmp.ne.s32.totalorder %s230, %s231
      %p243 = scmp.eq.s32.totalorder %s36, 1
      %p244 = por %p242, %p243
      %p246 = scmp.ne.s32.totalorder %s231, %s245
      %p247 = scmp.eq.s32.totalorder %s36, 0
      %p248 = por %p246, %p247
      %s250 = sadd.s32 %s249, 1
      %p253 = scmp.eq.s32.totalorder %s30, 1
      %p254 = scmp.ne.s32.totalorder %s249, %s251
      %p255 = scmp.eq.s32.totalorder %s30, 0
      %p256 = por %p254, %p255
      %p257 = scmp.ne.s32.totalorder %s249, %s251
      %p258 = scmp.eq.s32.totalorder %s35, 1
      %p259 = por %p257, %p258
      %p260 = scmp.ne.s32.totalorder %s251, %s252
      %p261 = scmp.eq.s32.totalorder %s35, 0
      %p262 = por %p260, %p261
      %p263 = scmp.ne.s32.totalorder %s251, %s252
      %p264 = scmp.eq.s32.totalorder %s36, 1
      %p265 = por %p263, %p264
      %p267 = scmp.ne.s32.totalorder %s252, %s266
      %p268 = scmp.eq.s32.totalorder %s36, 0
      %p269 = por %p267, %p268
      %s271 = sadd.s32 %s270, 1
      %p274 = scmp.eq.s32.totalorder %s30, 1
      %p275 = scmp.ne.s32.totalorder %s270, %s272
      %p276 = scmp.eq.s32.totalorder %s30, 0
      %p277 = por %p275, %p276
      %p278 = scmp.ne.s32.totalorder %s270, %s272
      %p279 = scmp.eq.s32.totalorder %s35, 1
      %p280 = por %p278, %p279
      %p281 = scmp.ne.s32.totalorder %s272, %s273
      %p282 = scmp.eq.s32.totalorder %s35, 0
      %p283 = por %p281, %p282
      %p284 = scmp.ne.s32.totalorder %s272, %s273
      %p285 = scmp.eq.s32.totalorder %s36, 1
      %p286 = por %p284, %p285
      %p288 = scmp.ne.s32.totalorder %s273, %s287
      %p289 = scmp.eq.s32.totalorder %s36, 0
      %p290 = por %p288, %p289
      %s291 = ssub.s32 %s37, %s49
      %p292 = scmp.eq.s32.totalorder %s291, 0
      %s294 = sadd.s32 %s293, 1
      %s295 = scalar_select %p292, %s293, %s294
      %p298 = pneg %p292
      %p299 = scmp.eq.s32.totalorder %s30, 1
      %p300 = por %p298, %p299
      %p301 = scmp.ne.s32.totalorder %s293, %s296
      %p302 = scmp.eq.s32.totalorder %s30, 0
      %p303 = por %p301, %p302
      %p304 = scmp.ne.s32.totalorder %s293, %s296
      %p305 = scmp.eq.s32.totalorder %s35, 1
      %p306 = por %p304, %p305
      %p307 = scmp.ne.s32.totalorder %s296, %s297
      %p308 = scmp.eq.s32.totalorder %s35, 0
      %p309 = por %p307, %p308
      %p310 = scmp.ne.s32.totalorder %s296, %s297
      %p311 = scmp.eq.s32.totalorder %s36, 1
      %p312 = por %p310, %p311
      %p314 = scmp.ne.s32.totalorder %s297, %s313
      %p315 = scmp.eq.s32.totalorder %s36, 0
      %p316 = por %p314, %p315
      %p317 = scmp.le.s32.totalorder 1, %s30
      %p318 = scmp.lt.s32.totalorder %s30, 3
      %p319 = pnand %p317, %p318
      %p320 = pneg %p319
      // Predicated region
      $region9: #{sage_layer_forward.1} parent=5 // pred_check
        _
      $region10: #{sage_layer_forward.1} parent=5 // pred_check_branch
        %322 = sbr.rel (%p319) target = $region12
      $region11: #{sage_layer_forward.1} parent=5 // pred_region
        %s323 = ssub.s32 %s30, 1
        // Predicated region
        $region13: #{sage_layer_forward.1} parent=11 // pred_check
          %p324 = pneg %p199
        $region14: #{sage_layer_forward.1} parent=11 // pred_check_branch
          %326 = sbr.rel (%p324) target = $region16
        $region15: #{sage_layer_forward.1} parent=11 // pred_region
          _
        $region16: #{sage_layer_forward.1} parent=11 // pred_fallthru
          _
        // Predicated region
        $region17: #{sage_layer_forward.1} parent=11 // pred_check
          %p327 = pneg %p220
        $region18: #{sage_layer_forward.1} parent=11 // pred_check_branch
          %329 = sbr.rel (%p327) target = $region20
        $region19: #{sage_layer_forward.1} parent=11 // pred_region
          _
        $region20: #{sage_layer_forward.1} parent=11 // pred_fallthru
          _
        // Predicated region
        $region21: #{sage_layer_forward.1} parent=11 // pred_check
          %p330 = pneg %p241
        $region22: #{sage_layer_forward.1} parent=11 // pred_check_branch
          %332 = sbr.rel (%p330) target = $region24
        $region23: #{sage_layer_forward.1} parent=11 // pred_region
          _
        $region24: #{sage_layer_forward.1} parent=11 // pred_fallthru
          _
        // Predicated region
        $region25: #{sage_layer_forward.1} parent=11 // pred_check
          %p333 = pneg %p262
        $region26: #{sage_layer_forward.1} parent=11 // pred_check_branch
          %335 = sbr.rel (%p333) target = $region28
        $region27: #{sage_layer_forward.1} parent=11 // pred_region
          _
        $region28: #{sage_layer_forward.1} parent=11 // pred_fallthru
          _
        // Predicated region
        $region29: #{sage_layer_forward.1} parent=11 // pred_check
          %p336 = pneg %p283
        $region30: #{sage_layer_forward.1} parent=11 // pred_check_branch
          %338 = sbr.rel (%p336) target = $region32
        $region31: #{sage_layer_forward.1} parent=11 // pred_region
          _
        $region32: #{sage_layer_forward.1} parent=11 // pred_fallthru
          _
      $region12: #{sage_layer_forward.1} parent=5 // pred_fallthru
        _
      %p339 = scmp.lt.s32.totalorder %s30, 2
      // Predicated region
      $region33: #{sage_layer_forward.1} parent=5 // pred_check
        %p340 = pneg %p339
      $region34: #{sage_layer_forward.1} parent=5 // pred_check_branch
        %342 = sbr.rel (%p340) target = $region36
      $region35: #{sage_layer_forward.1} parent=5 // pred_region
        // Predicated region
        $region37: #{sage_layer_forward.1} parent=35 // pred_check
          %p343 = pneg %p78
        $region38: #{sage_layer_forward.1} parent=35 // pred_check_branch
          %345 = sbr.rel (%p343) target = $region40
        $region39: #{sage_layer_forward.1} parent=35 // pred_region
          %s346 = sld [smem:[#allocation4 + %s37]]
          %s347 = sld [smem:[#allocation5 + %s37]]
          %s348 = ssub.s32 %s347, 1
          %p349 = scmp.gt.s32.totalorder %s348, 0
          %s350 = scalar_select %p349, %s348, 0
          %p351 = scmp.lt.s32.totalorder %s38, %s350
          %s352 = scalar_select %p351, %s38, %s350
          %s353 = sadd.s32 %s346, %s352
          %p354 = scmp.lt.s32.totalorder %s353, 0
          %s355 = scalar_select %p354, %s353, 0
          %s356 = scalar_lea.vmem %s2, %s355
          %s357 = sld [smem:[#allocation4 + %s37]]
          %s358 = sld [smem:[#allocation5 + %s37]]
          %s359 = ssub.s32 %s358, 1
          %p360 = scmp.gt.s32.totalorder %s359, 0
          %s361 = scalar_select %p360, %s359, 0
          %p362 = scmp.lt.s32.totalorder %s38, %s361
          %s363 = scalar_select %p362, %s38, %s361
          %s364 = sadd.s32 %s357, %s363
        $region40: #{sage_layer_forward.1} parent=35 // pred_fallthru
          _
        // Predicated region
        $region41: #{sage_layer_forward.1} parent=35 // pred_check
          %p365 = pneg %p120
        $region42: #{sage_layer_forward.1} parent=35 // pred_check_branch
          %367 = sbr.rel (%p365) target = $region44
        $region43: #{sage_layer_forward.1} parent=35 // pred_region
          %s368 = sld [smem:[#allocation4 + %s37]]
          %s369 = sld [smem:[#allocation5 + %s37]]
          %s370 = ssub.s32 %s369, 1
          %p371 = scmp.gt.s32.totalorder %s370, 0
          %s372 = scalar_select %p371, %s370, 0
          %p373 = scmp.lt.s32.totalorder %s38, %s372
          %s374 = scalar_select %p373, %s38, %s372
          %s375 = sadd.s32 %s368, %s374
          %s376 = smul.u32 16, %s375
          %p377 = scmp.lt.s32.totalorder %s376, 15
          %s378 = scalar_select %p377, %s376, 15
          %s379 = smul.addr %s378, 4
          %s380 = scalar_lea.vmem %s3, %s379
          %s381 = sld [smem:[#allocation4 + %s37]]
          %s382 = sld [smem:[#allocation5 + %s37]]
          %s383 = ssub.s32 %s382, 1
          %p384 = scmp.gt.s32.totalorder %s383, 0
          %s385 = scalar_select %p384, %s383, 0
          %p386 = scmp.lt.s32.totalorder %s38, %s385
          %s387 = scalar_select %p386, %s38, %s385
          %s388 = sadd.s32 %s381, %s387
          %s389 = smul.u32 16, %s388
        $region44: #{sage_layer_forward.1} parent=35 // pred_fallthru
          _
        // Predicated region
        $region45: #{sage_layer_forward.1} parent=35 // pred_check
          %p390 = pneg %p146
        $region46: #{sage_layer_forward.1} parent=35 // pred_check_branch
          %392 = sbr.rel (%p390) target = $region48
        $region47: #{sage_layer_forward.1} parent=35 // pred_region
          %p393 = scmp.lt.s32.totalorder %s37, 1
          %s394 = scalar_select %p393, %s37, 1
          %s395 = smul.addr %s394, 4
          %s396 = scalar_lea.vmem %s4, %s395
        $region48: #{sage_layer_forward.1} parent=35 // pred_fallthru
          _
        // Predicated region
        $region49: #{sage_layer_forward.1} parent=35 // pred_check
          %p397 = pneg %p172
        $region50: #{sage_layer_forward.1} parent=35 // pred_check_branch
          %399 = sbr.rel (%p397) target = $region52
        $region51: #{sage_layer_forward.1} parent=35 // pred_region
          %p400 = scmp.lt.s32.totalorder %s37, 1
          %s401 = scalar_select %p400, %s37, 1
          %s402 = smul.addr %s401, 8
          %s403 = scalar_lea.vmem %s5, %s402
        $region52: #{sage_layer_forward.1} parent=35 // pred_fallthru
          _
      $region36: #{sage_layer_forward.1} parent=5 // pred_fallthru
        _
      %p404 = scmp.le.s32.totalorder 1, %s30
      %p405 = scmp.lt.s32.totalorder %s30, 3
      %p406 = pnand %p404, %p405
      %p407 = pneg %p406
      // Predicated region
      $region53: #{sage_layer_forward.1} parent=5 // pred_check
        _
      $region54: #{sage_layer_forward.1} parent=5 // pred_check_branch
        %409 = sbr.rel (%p406) target = $region56
      $region55: #{sage_layer_forward.1} parent=5 // pred_region
        %s410 = ssub.s32 %s30, 1
        %s411 = sld [smem:[#allocation4 + %s39]]
        %s412 = sld [smem:[#allocation5 + %s39]]
        %s413 = ssub.s32 %s412, 1
        %p414 = scmp.gt.s32.totalorder %s413, 0
        %s415 = scalar_select %p414, %s413, 0
        %p416 = scmp.lt.s32.totalorder %s40, %s415
        %s417 = scalar_select %p416, %s40, %s415
        %s418 = sadd.s32 %s411, %s417
        %p419 = scmp.lt.s32.totalorder %s418, 0
        %s420 = scalar_select %p419, %s418, 0
        %s421 = scalar_lea.vmem %s2, %s420
        %p422 = pneg %p84
        %p423 = pneg %p81
        %s424 = sld [smem:[#allocation4 + %s39]]
        %s425 = sld [smem:[#allocation5 + %s39]]
        %s426 = ssub.s32 %s425, 1
        %p427 = scmp.gt.s32.totalorder %s426, 0
        %s428 = scalar_select %p427, %s426, 0
        %p429 = scmp.lt.s32.totalorder %s40, %s428
        %s430 = scalar_select %p429, %s40, %s428
        %s431 = sadd.s32 %s424, %s430
        %s432 = smul.u32 16, %s431
        %p433 = scmp.lt.s32.totalorder %s432, 15
        %s434 = scalar_select %p433, %s432, 15
        %s435 = smul.addr %s434, 4
        %s436 = scalar_lea.vmem %s3, %s435
        %p437 = pneg %p126
        %p438 = pneg %p123
        %p439 = scmp.lt.s32.totalorder %s39, 1
        %s440 = scalar_select %p439, %s39, 1
        %s441 = smul.addr %s440, 4
        %s442 = scalar_lea.vmem %s4, %s441
        %p443 = pneg %p152
        %p444 = pneg %p149
        %p445 = scmp.lt.s32.totalorder %s39, 1
        %s446 = scalar_select %p445, %s39, 1
        %s447 = smul.addr %s446, 8
        %s448 = scalar_lea.vmem %s5, %s447
        %p449 = pneg %p178
        %p450 = pneg %p175
        %p451 = pneg %p199
        %p452 = pneg %p196
        %p453 = pneg %p220
        %p454 = pneg %p217
        %p455 = pneg %p241
        %p456 = pneg %p238
        %p457 = pneg %p262
        %p458 = pneg %p259
        %p459 = pneg %p283
        %p460 = pneg %p280
        %p461 = pneg %p309
        %p462 = pneg %p306
        %s463 = sand.u32 %s296, 1
        %s464 = scalar_lea.sflag [#allocation7], %s463
        %s465 = sand.u32 %s296, 1
        %s466 = smul.addr %s465, 8
        %s467 = scalar_lea.vmem [#allocation6], %s466
        %s468 = sld [smem:[#allocation4 + %s39]]
        %s469 = sld [smem:[#allocation5 + %s39]]
        %s470 = ssub.s32 %s469, 1
        %p471 = scmp.gt.s32.totalorder %s470, 0
        %s472 = scalar_select %p471, %s470, 0
        %p473 = scmp.lt.s32.totalorder %s40, %s472
        %s474 = scalar_select %p473, %s40, %s472
        %s475 = sadd.s32 %s468, %s474
        %p476 = scmp.lt.s32.totalorder %s475, 0
        %s477 = scalar_select %p476, %s475, 0
        %s478 = scalar_lea.vmem %s2, %s477
        %s479 = sld [smem:[#allocation4 + %s39]]
        %s480 = sld [smem:[#allocation5 + %s39]]
        %s481 = ssub.s32 %s480, 1
        %p482 = scmp.gt.s32.totalorder %s481, 0
        %s483 = scalar_select %p482, %s481, 0
        %p484 = scmp.lt.s32.totalorder %s40, %s483
        %s485 = scalar_select %p484, %s40, %s483
        %s486 = sadd.s32 %s479, %s485
        %s487 = sld [smem:[#allocation4 + %s39]]
        %s488 = sld [smem:[#allocation5 + %s39]]
        %s489 = ssub.s32 %s488, 1
        %p490 = scmp.gt.s32.totalorder %s489, 0
        %s491 = scalar_select %p490, %s489, 0
        %p492 = scmp.lt.s32.totalorder %s40, %s491
        %s493 = scalar_select %p492, %s40, %s491
        %s494 = sadd.s32 %s487, %s493
        %s495 = smul.u32 16, %s494
        %p496 = scmp.lt.s32.totalorder %s495, 15
        %s497 = scalar_select %p496, %s495, 15
        %s498 = smul.addr %s497, 4
        %s499 = scalar_lea.vmem %s3, %s498
        %s500 = sld [smem:[#allocation4 + %s39]]
        %s501 = sld [smem:[#allocation5 + %s39]]
        %s502 = ssub.s32 %s501, 1
        %p503 = scmp.gt.s32.totalorder %s502, 0
        %s504 = scalar_select %p503, %s502, 0
        %p505 = scmp.lt.s32.totalorder %s40, %s504
        %s506 = scalar_select %p505, %s40, %s504
        %s507 = sadd.s32 %s500, %s506
        %s508 = smul.u32 16, %s507
        %p509 = scmp.lt.s32.totalorder %s39, 1
        %s510 = scalar_select %p509, %s39, 1
        %s511 = smul.addr %s510, 4
        %s512 = scalar_lea.vmem %s4, %s511
        %p513 = scmp.lt.s32.totalorder %s39, 1
        %s514 = scalar_select %p513, %s39, 1
        %s515 = smul.addr %s514, 8
        %s516 = scalar_lea.vmem %s5, %s515
        %p518 = scmp.eq.s32.totalorder %s40, 0
        // Predicated region
        $region57: #{sage_layer_forward.1} parent=55 // pred_check
          %p519 = pneg %p518
        $region58: #{sage_layer_forward.1} parent=55 // pred_check_branch
          %521 = sbr.rel (%p519) target = $region60
        $region59: #{sage_layer_forward.1} parent=55 // pred_region
          %522 = vst [vmem:[#allocation2] sm:$0xff] 0.0
        $region60: #{sage_layer_forward.1} parent=55 // pred_fallthru
          _
        %s523 = sld [smem:[#allocation5 + %s39]]
        %p524 = scmp.lt.s32.totalorder %s40, %s523
        // Predicated region
        $region61: #{sage_layer_forward.1} parent=55 // pred_check
          %p525 = pneg %p524
        $region62: #{sage_layer_forward.1} parent=55 // pred_check_branch
          %527 = sbr.rel (%p525) target = $region64
        $region63: #{sage_layer_forward.1} parent=55 // pred_region
          %v528 = vld [vmem:[%s499] sm:$0xf]
          %v529 = vld [vmem:[%s499 + $0x4] sm:$0xf]
          %v530 = vld [vmem:[%s499 + $0x8] sm:$0xf]
          %v531 = vld [vmem:[%s499 + $0xc] sm:$0xf]
          %v532 = vld [vmem:[%s499 + $0x10] sm:$0xf]
          %v533 = vld [vmem:[%s499 + $0x14] sm:$0xf]
          %v534 = vld [vmem:[%s499 + $0x18] sm:$0xf]
          %v535 = vld [vmem:[%s499 + $0x1c] sm:$0xf]
          %v536 = vld [vmem:[%s499 + $0x20] sm:$0xf]
          %v537 = vld [vmem:[%s499 + $0x24] sm:$0xf]
          %v538 = vld [vmem:[%s499 + $0x28] sm:$0xf]
          %v539 = vld [vmem:[%s499 + $0x2c] sm:$0xf]
          %v540 = vld [vmem:[%s499 + $0x30] sm:$0xf]
          %v541 = vld [vmem:[%s499 + $0x34] sm:$0xf]
          %v542 = vld [vmem:[%s499 + $0x38] sm:$0xf]
          %v543 = vld [vmem:[%s499 + $0x3c] sm:$0xf]
          %v544 = vld [vmem:[%s6] sm:$0xf]
          %v545 = vld [vmem:[%s6 + $0x4] sm:$0xf]
          %v546 = vld [vmem:[%s6 + $0x8] sm:$0xf]
          %v547 = vld [vmem:[%s6 + $0xc] sm:$0xf]
          %v548 = vld [vmem:[%s6 + $0x10] sm:$0xf]
          %v549 = vld [vmem:[%s6 + $0x14] sm:$0xf]
          %v550 = vld [vmem:[%s6 + $0x18] sm:$0xf]
          %v551 = vld [vmem:[%s6 + $0x1c] sm:$0xf]
          %v552 = vld [vmem:[%s6 + $0x20] sm:$0xf]
          %v553 = vld [vmem:[%s6 + $0x24] sm:$0xf]
          %v554 = vld [vmem:[%s6 + $0x28] sm:$0xf]
          %v555 = vld [vmem:[%s6 + $0x2c] sm:$0xf]
          %v556 = vld [vmem:[%s6 + $0x30] sm:$0xf]
          %v557 = vld [vmem:[%s6 + $0x34] sm:$0xf]
          %v558 = vld [vmem:[%s6 + $0x38] sm:$0xf]
          %v559 = vld [vmem:[%s6 + $0x3c] sm:$0xf]
          %v576 = vunpack.c.l.b16 %v528
          %v577 = vunpack.c.l.b16 %v529
          %v578 = vunpack.c.l.b16 %v530
          %v579 = vunpack.c.l.b16 %v531
          %v580 = vunpack.c.l.b16 %v532
          %v581 = vunpack.c.l.b16 %v533
          %v582 = vunpack.c.l.b16 %v534
          %v583 = vunpack.c.l.b16 %v535
          %v584 = vunpack.c.l.b16 %v536
          %v585 = vunpack.c.l.b16 %v537
          %v586 = vunpack.c.l.b16 %v538
          %v587 = vunpack.c.l.b16 %v539
          %v588 = vunpack.c.l.b16 %v540
          %v589 = vunpack.c.l.b16 %v541
          %v590 = vunpack.c.l.b16 %v542
          %v591 = vunpack.c.l.b16 %v543
          %v592 = vpack.c.b16 %v577, %v576
          %v593 = vpack.c.b16 %v579, %v578
          %v594 = vpack.c.b16 %v581, %v580
          %v595 = vpack.c.b16 %v583, %v582
          %v596 = vpack.c.b16 %v585, %v584
          %v597 = vpack.c.b16 %v587, %v586
          %v598 = vpack.c.b16 %v589, %v588
          %v599 = vpack.c.b16 %v591, %v590
          %v624 = vunpack.c.l.b16 %v544
          %v625 = vunpack.c.l.b16 %v545
          %v626 = vunpack.c.l.b16 %v546
          %v627 = vunpack.c.l.b16 %v547
          %v628 = vunpack.c.l.b16 %v548
          %v629 = vunpack.c.l.b16 %v549
          %v630 = vunpack.c.l.b16 %v550
          %v631 = vunpack.c.l.b16 %v551
          %v632 = vunpack.c.l.b16 %v552
          %v633 = vunpack.c.l.b16 %v553
          %v634 = vunpack.c.l.b16 %v554
          %v635 = vunpack.c.l.b16 %v555
          %v636 = vunpack.c.l.b16 %v556
          %v637 = vunpack.c.l.b16 %v557
          %v638 = vunpack.c.l.b16 %v558
          %v639 = vunpack.c.l.b16 %v559
          %v640 = vpack.c.b16 %v625, %v624
          %v641 = vpack.c.b16 %v627, %v626
          %v642 = vpack.c.b16 %v629, %v628
          %v643 = vpack.c.b16 %v631, %v630
          %v644 = vpack.c.b16 %v633, %v632
          %v645 = vpack.c.b16 %v635, %v634
          %v646 = vpack.c.b16 %v637, %v636
          %v647 = vpack.c.b16 %v639, %v638
          %656 = vmatprep.subr.bf16.mxu0 0
          %657 = vmatpush1.bf16.msra.mxu0 %v647
          %658 = vmatprep.subr.bf16.mxu0 0
          %659 = vmatpush1.bf16.msra.mxu0 %v646
          %660 = vmatprep.subr.bf16.mxu0 0
          %661 = vmatpush1.bf16.msra.mxu0 %v645
          %662 = vmatprep.subr.bf16.mxu0 0
          %663 = vmatpush1.bf16.msra.mxu0 %v644
          %664 = vmatprep.subr.bf16.mxu0 0
          %665 = vmatpush1.bf16.msra.mxu0 %v643
          %666 = vmatprep.subr.bf16.mxu0 0
          %667 = vmatpush1.bf16.msra.mxu0 %v642
          %668 = vmatprep.subr.bf16.mxu0 0
          %669 = vmatpush1.bf16.msra.mxu0 %v641
          %670 = vmatprep.subr.bf16.mxu0 0
          %671 = vmatpush1.bf16.msra.mxu0 %v640
          %672 = vmatprep.subr.bf16.mxu0 0
          %673 = vmatpush2.bf16.msra.mxu0 0
          %674 = vmatprep.subr.bf16.mxu0 0
          %675 = vmatpush2.bf16.msra.mxu0 0
          %676 = vmatprep.subr.bf16.mxu0 0
          %677 = vmatpush2.bf16.msra.mxu0 0
          %678 = vmatprep.subr.bf16.mxu0 0
          %679 = vmatpush2.bf16.msra.mxu0 0
          %680 = vmatprep.subr.bf16.mxu0 0
          %681 = vmatpush2.bf16.msra.mxu0 0
          %682 = vmatprep.subr.bf16.mxu0 0
          %683 = vmatpush2.bf16.msra.mxu0 0
          %684 = vmatprep.subr.bf16.mxu0 0
          %685 = vmatpush2.bf16.msra.mxu0 0
          %686 = vmatprep.subr.bf16.mxu0 0
          %687 = vmatpush2.bf16.msra.mxu0 0
          %688 = vmatprep.mubr.bf16.mxu0 0
          %689 = vmatmul.mubr.bf16.gmra.mxu0 %v592
          %v690 = vpop.f32.mrf.mxu0
          %v691 = vadd.f32 0.0, %v690
          %v692 = vpop.f32.mrf.mxu0
          %v693 = vpop.f32.mrf.mxu0
          %v694 = vadd.f32 0.0, %v693
          %v695 = vpop.f32.mrf.mxu0
          %696 = vmatprep.mubr.bf16.mxu0 0
          %697 = vmatmul.mubr.bf16.gmra.mxu0 %v593
          %v698 = vpop.f32.mrf.mxu0
          %v699 = vadd.f32 0.0, %v698
          %v700 = vpop.f32.mrf.mxu0
          %v701 = vpop.f32.mrf.mxu0
          %v702 = vadd.f32 0.0, %v701
          %v703 = vpop.f32.mrf.mxu0
          %704 = vmatprep.mubr.bf16.mxu0 0
          %705 = vmatmul.mubr.bf16.gmra.mxu0 %v594
          %v706 = vpop.f32.mrf.mxu0
          %v707 = vadd.f32 0.0, %v706
          %v708 = vpop.f32.mrf.mxu0
          %v709 = vpop.f32.mrf.mxu0
          %v710 = vadd.f32 0.0, %v709
          %v711 = vpop.f32.mrf.mxu0
          %712 = vmatprep.mubr.bf16.mxu0 0
          %713 = vmatmul.mubr.bf16.gmra.mxu0 %v595
          %v714 = vpop.f32.mrf.mxu0
          %v715 = vadd.f32 0.0, %v714
          %v716 = vpop.f32.mrf.mxu0
          %v717 = vpop.f32.mrf.mxu0
          %v718 = vadd.f32 0.0, %v717
          %v719 = vpop.f32.mrf.mxu0
          %720 = vmatprep.mubr.bf16.mxu0 0
          %721 = vmatmul.mubr.bf16.gmra.mxu0 %v596
          %v722 = vpop.f32.mrf.mxu0
          %v723 = vadd.f32 0.0, %v722
          %v724 = vpop.f32.mrf.mxu0
          %v725 = vpop.f32.mrf.mxu0
          %v726 = vadd.f32 0.0, %v725
          %v727 = vpop.f32.mrf.mxu0
          %728 = vmatprep.mubr.bf16.mxu0 0
          %729 = vmatmul.mubr.bf16.gmra.mxu0 %v597
          %v730 = vpop.f32.mrf.mxu0
          %v731 = vadd.f32 0.0, %v730
          %v732 = vpop.f32.mrf.mxu0
          %v733 = vpop.f32.mrf.mxu0
          %v734 = vadd.f32 0.0, %v733
          %v735 = vpop.f32.mrf.mxu0
          %736 = vmatprep.mubr.bf16.mxu0 0
          %737 = vmatmul.mubr.bf16.gmra.mxu0 %v598
          %v738 = vpop.f32.mrf.mxu0
          %v739 = vadd.f32 0.0, %v738
          %v740 = vpop.f32.mrf.mxu0
          %v741 = vpop.f32.mrf.mxu0
          %v742 = vadd.f32 0.0, %v741
          %v743 = vpop.f32.mrf.mxu0
          %744 = vmatprep.mubr.bf16.mxu0 0
          %745 = vmatmul.mubr.bf16.gmra.mxu0 %v599
          %v746 = vpop.f32.mrf.mxu0
          %v747 = vadd.f32 0.0, %v746
          %v748 = vpop.f32.mrf.mxu0
          %v749 = vpop.f32.mrf.mxu0
          %v750 = vadd.f32 0.0, %v749
          %v751 = vpop.f32.mrf.mxu0
          %752 = vdwg.mxu0
          %v753 = vlaneseq
          %v754 = vshrl.u32 %v753, 7
          %v755 = vld [vmem:[%s478] sm:$0x1]
          %s756 = smul.u32 %s39, 8
          %v757 = vstv %s756
          %v758 = vsub.s32 %v755, %v757
          %v759 = vlaneseq
          %v760 = vshrl.u32 %v759, 7
          %v761 = vsub.s32 0, %v760
          %v762 = vrot.slane %v758, %v761
          %vm763 = vcmp.eq.s32.totalorder %v754, %v762
          %v764 = vsel %vm763, 1, 0
          %v765 = vcvt.s32.f32 %v764
          %v766 = vpack.c.bf16 %v765, %v765
          %v767 = vld [vmem:[#allocation2] sm:$0xff]
          %v768 = vpack.c.bf16 %v694, %v691
          %v769 = vpack.c.bf16 %v702, %v699
          %v770 = vpack.c.bf16 %v710, %v707
          %v771 = vpack.c.bf16 %v718, %v715
          %v772 = vpack.c.bf16 %v726, %v723
          %v773 = vpack.c.bf16 %v734, %v731
          %v774 = vpack.c.bf16 %v742, %v739
          %v775 = vpack.c.bf16 %v750, %v747
          %776 = vmatprep.subr.bf16.mxu0 0
          %777 = vmatpush1.bf16.msra.mxu0 %v775
          %778 = vmatprep.subr.bf16.mxu0 0
          %779 = vmatpush1.bf16.msra.mxu0 %v774
          %780 = vmatprep.subr.bf16.mxu0 0
          %781 = vmatpush1.bf16.msra.mxu0 %v773
          %782 = vmatprep.subr.bf16.mxu0 0
          %783 = vmatpush1.bf16.msra.mxu0 %v772
          %784 = vmatprep.subr.bf16.mxu0 0
          %785 = vmatpush1.bf16.msra.mxu0 %v771
          %786 = vmatprep.subr.bf16.mxu0 0
          %787 = vmatpush1.bf16.msra.mxu0 %v770
          %788 = vmatprep.subr.bf16.mxu0 0
          %789 = vmatpush1.bf16.msra.mxu0 %v769
          %790 = vmatprep.subr.bf16.mxu0 0
          %791 = vmatpush1.bf16.msra.mxu0 %v768
          %792 = vmatprep.subr.bf16.mxu0 0
          %793 = vmatpush2.bf16.msra.mxu0 0
          %794 = vmatprep.subr.bf16.mxu0 0
          %795 = vmatpush2.bf16.msra.mxu0 0
          %796 = vmatprep.subr.bf16.mxu0 0
          %797 = vmatpush2.bf16.msra.mxu0 0
          %798 = vmatprep.subr.bf16.mxu0 0
          %799 = vmatpush2.bf16.msra.mxu0 0
          %800 = vmatprep.subr.bf16.mxu0 0
          %801 = vmatpush2.bf16.msra.mxu0 0
          %802 = vmatprep.subr.bf16.mxu0 0
          %803 = vmatpush2.bf16.msra.mxu0 0
          %804 = vmatprep.subr.bf16.mxu0 0
          %805 = vmatpush2.bf16.msra.mxu0 0
          %806 = vmatprep.subr.bf16.mxu0 0
          %807 = vmatpush2.bf16.msra.mxu0 0
          %808 = vmatprep.mubr.bf16.mxu0 0
          %809 = vmatmul.mubr.bf16.gmra.mxu0 %v766
          %v810 = vpop.f32.mrf.mxu0
          %v811 = vadd.f32 0.0, %v810
          %v812 = vpop.f32.mrf.mxu0
          %v813 = vpop.f32.mrf.mxu0
          %v814 = vpop.f32.mrf.mxu0
          %815 = vdwg.mxu0
          %v816 = vadd.f32 %v767, %v811
          %817 = vst [vmem:[#allocation2] sm:$0xff] %v816
        $region64: #{sage_layer_forward.1} parent=55 // pred_fallthru
          _
        // Predicated region
        $region65: #{sage_layer_forward.1} parent=55 // pred_check
          %p818 = pneg %p518
        $region66: #{sage_layer_forward.1} parent=55 // pred_check_branch
          %820 = sbr.rel (%p818) target = $region68
        $region67: #{sage_layer_forward.1} parent=55 // pred_region
          %v821 = vld [vmem:[%s516] sm:$0xff]
          %v822 = vld [vmem:[#allocation2] sm:$0xff]
          %824 = vset.pattern.permute.xlu0 0
          %825 = vperm.xlu0 %824, %v821
          %v826 = vpop.permute.xlu0 %825
          %v828 = vmul.f32 %v822, %v826
          %v829 = vld [vmem:[%s9] sm:$0x1]
          %v831 = vlaneseq
          %v832 = vshrl.u32 %v831, 7
          %v833 = vsub.s32 0, %v832
          %v834 = vrot.slane %v829, %v833
          %836 = vset.pattern.permute.xlu0 1
          %837 = vperm.xlu0 %836, %v821
          %v838 = vpop.permute.xlu0 %837
          %v840 = vmul.f32 %v834, %v838
          %v841 = vadd.f32 %v828, %v840
          %v842 = vpack.c.bf16 %v841, %v841
          %v843 = vld [vmem:[%s512] sm:$0xf]
          %v844 = vld [vmem:[%s7] sm:$0xf]
          %v845 = vld [vmem:[%s7 + $0x4] sm:$0xf]
          %v846 = vld [vmem:[%s7 + $0x8] sm:$0xf]
          %v847 = vld [vmem:[%s7 + $0xc] sm:$0xf]
          %v848 = vld [vmem:[%s8] sm:$0xf]
          %v849 = vld [vmem:[%s8 + $0x4] sm:$0xf]
          %v850 = vld [vmem:[%s8 + $0x8] sm:$0xf]
          %v851 = vld [vmem:[%s8 + $0xc] sm:$0xf]
          %v852 = vld [vmem:[%s8 + $0x10] sm:$0xf]
          %v853 = vld [vmem:[%s8 + $0x14] sm:$0xf]
          %v854 = vld [vmem:[%s8 + $0x18] sm:$0xf]
          %v855 = vld [vmem:[%s8 + $0x1c] sm:$0xf]
          %v856 = vld [vmem:[%s8 + $0x20] sm:$0xf]
          %v857 = vld [vmem:[%s8 + $0x24] sm:$0xf]
          %v858 = vld [vmem:[%s8 + $0x28] sm:$0xf]
          %v859 = vld [vmem:[%s8 + $0x2c] sm:$0xf]
          %v860 = vld [vmem:[%s8 + $0x30] sm:$0xf]
          %v861 = vld [vmem:[%s8 + $0x34] sm:$0xf]
          %v862 = vld [vmem:[%s8 + $0x38] sm:$0xf]
          %v863 = vld [vmem:[%s8 + $0x3c] sm:$0xf]
          %v880 = vunpack.c.l.b16 %v848
          %v881 = vunpack.c.l.b16 %v849
          %v882 = vunpack.c.l.b16 %v850
          %v883 = vunpack.c.l.b16 %v851
          %v884 = vunpack.c.l.b16 %v852
          %v885 = vunpack.c.l.b16 %v853
          %v886 = vunpack.c.l.b16 %v854
          %v887 = vunpack.c.l.b16 %v855
          %v888 = vunpack.c.l.b16 %v856
          %v889 = vunpack.c.l.b16 %v857
          %v890 = vunpack.c.l.b16 %v858
          %v891 = vunpack.c.l.b16 %v859
          %v892 = vunpack.c.l.b16 %v860
          %v893 = vunpack.c.l.b16 %v861
          %v894 = vunpack.c.l.b16 %v862
          %v895 = vunpack.c.l.b16 %v863
          %v896 = vpack.c.b16 %v881, %v880
          %v897 = vpack.c.b16 %v883, %v882
          %v898 = vpack.c.b16 %v885, %v884
          %v899 = vpack.c.b16 %v887, %v886
          %v900 = vpack.c.b16 %v889, %v888
          %v901 = vpack.c.b16 %v891, %v890
          %v902 = vpack.c.b16 %v893, %v892
          %v903 = vpack.c.b16 %v895, %v894
          %912 = vmatprep.subr.bf16.mxu0 0
          %913 = vmatpush1.bf16.msra.mxu0 %v903
          %914 = vmatprep.subr.bf16.mxu0 0
          %915 = vmatpush1.bf16.msra.mxu0 %v902
          %916 = vmatprep.subr.bf16.mxu0 0
          %917 = vmatpush1.bf16.msra.mxu0 %v901
          %918 = vmatprep.subr.bf16.mxu0 0
          %919 = vmatpush1.bf16.msra.mxu0 %v900
          %920 = vmatprep.subr.bf16.mxu0 0
          %921 = vmatpush1.bf16.msra.mxu0 %v899
          %922 = vmatprep.subr.bf16.mxu0 0
          %923 = vmatpush1.bf16.msra.mxu0 %v898
          %924 = vmatprep.subr.bf16.mxu0 0
          %925 = vmatpush1.bf16.msra.mxu0 %v897
          %926 = vmatprep.subr.bf16.mxu0 0
          %927 = vmatpush1.bf16.msra.mxu0 %v896
          %928 = vmatprep.subr.bf16.mxu0 0
          %929 = vmatpush2.bf16.msra.mxu0 0
          %930 = vmatprep.subr.bf16.mxu0 0
          %931 = vmatpush2.bf16.msra.mxu0 0
          %932 = vmatprep.subr.bf16.mxu0 0
          %933 = vmatpush2.bf16.msra.mxu0 0
          %934 = vmatprep.subr.bf16.mxu0 0
          %935 = vmatpush2.bf16.msra.mxu0 0
          %936 = vmatprep.subr.bf16.mxu0 0
          %937 = vmatpush2.bf16.msra.mxu0 0
          %938 = vmatprep.subr.bf16.mxu0 0
          %939 = vmatpush2.bf16.msra.mxu0 0
          %940 = vmatprep.subr.bf16.mxu0 0
          %941 = vmatpush2.bf16.msra.mxu0 0
          %942 = vmatprep.subr.bf16.mxu0 0
          %943 = vmatpush2.bf16.msra.mxu0 0
          %944 = vmatprep.mubr.bf16.mxu0 0
          %945 = vmatmul.mubr.bf16.gmra.mxu0 %v842
          %v946 = vpop.f32.mrf.mxu0
          %v947 = vadd.f32 0.0, %v946
          %v948 = vpop.f32.mrf.mxu0
          %v949 = vpop.f32.mrf.mxu0
          %v950 = vpop.f32.mrf.mxu0
          %951 = vdwg.mxu0
          %v956 = vunpack.c.l.b16 %v844
          %v957 = vunpack.c.l.b16 %v845
          %v958 = vunpack.c.l.b16 %v846
          %v959 = vunpack.c.l.b16 %v847
          %v960 = vpack.c.b16 %v957, %v956
          %v961 = vpack.c.b16 %v959, %v958
          %vm964 = vcmask 261120
          %v966 = vsel %vm964, %v843, 0
          %968 = vmatprep.subr.bf16.mxu0 0
          %969 = vmatpush1.bf16.msra.mxu0 0
          %970 = vmatprep.subr.bf16.mxu0 0
          %971 = vmatpush1.bf16.msra.mxu0 0
          %972 = vmatprep.subr.bf16.mxu0 0
          %973 = vmatpush1.bf16.msra.mxu0 0
          %974 = vmatprep.subr.bf16.mxu0 0
          %975 = vmatpush1.bf16.msra.mxu0 0
          %976 = vmatprep.subr.bf16.mxu0 0
          %977 = vmatpush1.bf16.msra.mxu0 0
          %978 = vmatprep.subr.bf16.mxu0 0
          %979 = vmatpush1.bf16.msra.mxu0 0
          %980 = vmatprep.subr.bf16.mxu0 0
          %981 = vmatpush1.bf16.msra.mxu0 %v961
          %982 = vmatprep.subr.bf16.mxu0 0
          %983 = vmatpush1.bf16.msra.mxu0 %v960
          %984 = vmatprep.subr.bf16.mxu0 0
          %985 = vmatpush2.bf16.msra.mxu0 0
          %986 = vmatprep.subr.bf16.mxu0 0
          %987 = vmatpush2.bf16.msra.mxu0 0
          %988 = vmatprep.subr.bf16.mxu0 0
          %989 = vmatpush2.bf16.msra.mxu0 0
          %990 = vmatprep.subr.bf16.mxu0 0
          %991 = vmatpush2.bf16.msra.mxu0 0
          %992 = vmatprep.subr.bf16.mxu0 0
          %993 = vmatpush2.bf16.msra.mxu0 0
          %994 = vmatprep.subr.bf16.mxu0 0
          %995 = vmatpush2.bf16.msra.mxu0 0
          %996 = vmatprep.subr.bf16.mxu0 0
          %997 = vmatpush2.bf16.msra.mxu0 0
          %998 = vmatprep.subr.bf16.mxu0 0
          %999 = vmatpush2.bf16.msra.mxu0 0
          %1000 = vmatprep.mubr.bf16.mxu0 0
          %1001 = vmatmul.mubr.bf16.gmra.mxu0 %v966
          %v1002 = vpop.f32.mrf.mxu0
          %v1003 = vadd.f32 %v947, %v1002
          %v1004 = vpop.f32.mrf.mxu0
          %v1005 = vpop.f32.mrf.mxu0
          %v1006 = vpop.f32.mrf.mxu0
          %1007 = vdwg.mxu0
          %v1008 = vld [vmem:[%s10] sm:$0x1]
          %v1010 = vlaneseq
          %v1011 = vshrl.u32 %v1010, 7
          %v1012 = vsub.s32 0, %v1011
          %v1013 = vrot.slane %v1008, %v1012
          %v1015 = vadd.f32 %v1003, %v1013
          %v1016 = vmax.f32 %v1015, 0.0
          %1017 = vst [vmem:[%s467] sm:$0xff] %v1016
        $region68: #{sage_layer_forward.1} parent=55 // pred_fallthru
          _
        %s1018 = sand.u32 %s296, 1
        %s1019 = scalar_lea.sflag [#allocation7], %s1018
        %s1020 = sand.u32 %s296, 1
        %s1021 = smul.addr %s1020, 8
        %s1022 = scalar_lea.vmem [#allocation6], %s1021
        // Predicated region
        $region69: #{sage_layer_forward.1} parent=55 // pred_check
          %p1023 = pneg %p306
        $region70: #{sage_layer_forward.1} parent=55 // pred_check_branch
          %1025 = sbr.rel (%p1023) target = $region72
        $region71: #{sage_layer_forward.1} parent=55 // pred_region
          %s1027 = ssub.s32 128, 128
          %1028 = vsyncadd %s1019, %s1027
          %s1029 = smul.addr %s39, 128
          %s1030 = scalar_lea.hbm %s11, %s1029
          %s1032 = sshll.u32 %s1022, 4
          %s1033 = int_to_ptr.vmem [resolvable:$true] %s1032
          %1035 = dma.vmem_to_hbm [thread:$0]  %s1033, 128, %s1030, %s1019
        $region72: #{sage_layer_forward.1} parent=55 // pred_fallthru
          _
      $region56: #{sage_layer_forward.1} parent=5 // pred_fallthru
        _
      %p1036 = scmp.le.s32.totalorder 2, %s30
      // Predicated region
      $region73: #{sage_layer_forward.1} parent=5 // pred_check
        %p1037 = pneg %p1036
      $region74: #{sage_layer_forward.1} parent=5 // pred_check_branch
        %1039 = sbr.rel (%p1037) target = $region76
      $region75: #{sage_layer_forward.1} parent=5 // pred_region
        %s1040 = ssub.s32 %s30, 2
        // Predicated region
        $region77: #{sage_layer_forward.1} parent=75 // pred_check
          %p1041 = pneg %p312
        $region78: #{sage_layer_forward.1} parent=75 // pred_check_branch
          %1043 = sbr.rel (%p1041) target = $region80
        $region79: #{sage_layer_forward.1} parent=75 // pred_region
          %s1044 = sand.u32 %s297, 1
          %s1045 = scalar_lea.sflag [#allocation7], %s1044
          %s1046 = sand.u32 %s297, 1
          %s1047 = smul.addr %s1046, 8
          %s1048 = scalar_lea.vmem [#allocation6], %s1047
          %1049 = dma.done %s1045, 128
        $region80: #{sage_layer_forward.1} parent=75 // pred_fallthru
          _
      $region76: #{sage_layer_forward.1} parent=5 // pred_fallthru
        _
    $region6: #{sage_layer_forward.1} parent=1 // loop_footer
      %s34 = sadd.s32 1, %s30
    $region7: #{sage_layer_forward.1} parent=1 // loop_footer_branch
      %29 = sbr.rel target = $region3
    $region8: #{sage_layer_forward.1} parent=1 // loop_exit
      _
    %1050 = vsyncpa [#allocation7], 1
    %s1051 = scalar_lea.sflag [#allocation7], 1
    %1052 = vsyncpa %s1051, 1

</llo_original>
